<compile_context>
chip_gen: v7x
topology: tpu7x:2x2x1
jax: 0.10.0
libtpu: 0.0.40
codegen_flags: <defaults>
</compile_context>

<pallas_src>
import jax
import jax.numpy as jnp
from jax.experimental import pallas as pl
from jax.experimental.pallas import tpu as pltpu


# ----------------------------------------------------------------------------
# Pallas kernel: out[r, e] = embs[r, e] * w[r, 0]
# ----------------------------------------------------------------------------
def _scale_rows_kernel(w_ref, embs_ref, out_ref):
    """w_ref: (TR, 1) f32; embs_ref/out_ref: (TR, E) native dtype."""
    out_ref[...] = embs_ref[...] * w_ref[...].astype(embs_ref.dtype)


def _pick_row_tile(n_rows, emb, itemsize, vmem_budget_bytes=20 * 1024 * 1024):
    """Row tile (multiple of the sublane count for this dtype) sized so the
    double-buffered (in + out + weight) blocks fit the budget, and capped so
    the grid has >= 2 steps whenever possible (v7x megacore split)."""
    sub = max(8, 32 // max(itemsize, 1))               # f32:8, bf16:16, int8:32
    per_row = 2 * (2 * emb * itemsize + 4)             # 2 buffers x (in+out+w)
    cap = max(sub, (vmem_budget_bytes // max(per_row, 1)) // sub * sub)
    half_rows = (n_rows + 1) // 2
    half = max(sub, ((half_rows + sub - 1) // sub) * sub)
    return int(min(cap, half))


# ----------------------------------------------------------------------------
# Batch-invariant sampling stage (tiny; deliberately in plain JAX)
# ----------------------------------------------------------------------------
def _sample_weight_matrix(time_causal_matrix, concept_causal_matrix, seq_len,
                          key, *, temperature, sample_type):
    """Returns (causal_matrix, s) where s[t, c] is the per-(step, concept)
    weight.  Mirrors the torch module: weights are divided by temperature
    BEFORE the outer product, and gumbel adds +log(-log(u)) (torch's sign)."""
    time_w = time_causal_matrix.astype(jnp.float32) / temperature
    conc_w = concept_causal_matrix.astype(jnp.float32) / temperature
    causal = jnp.outer(time_w, conc_w)                 # (max_len, concept_num)
    causal_seq = causal[:seq_len, :]
    if sample_type == "gumbel":
        # TODO(synk): noise from jax.random — same distribution as torch.rand
        # but cannot bit-match torch's RNG stream.
        u = jax.random.uniform(key, causal_seq.shape, dtype=jnp.float32,
                               minval=1e-7, maxval=1.0)
        s = jax.nn.sigmoid(causal_seq + jnp.log(-jnp.log(u)))
    elif sample_type == "bernoulli":
        probs = jax.nn.sigmoid(causal_seq)
        s = jax.random.bernoulli(key, probs).astype(jnp.float32)
    else:
        raise ValueError("Invalid sample_type. Choose 'gumbel' or 'bernoulli'.")
    return causal, s


# ----------------------------------------------------------------------------
# Forward
# ----------------------------------------------------------------------------
def time_causal_regulator_forward(concepts, concept_embs, time_causal_matrix,
                                  concept_causal_matrix, noise_key, *,
                                  temperature=0.1, l1_lambda=0.001,
                                  sample_type="gumbel",
                                  training=True, testing_sample=False):
    """JAX/Pallas equivalent of TimeCausalRegulator.forward.

    Returns (out_concept_embs, step_norm_loss); step_norm_loss is None when
    not training (matching the torch module)."""
    if (not training) and (not testing_sample):
        return concept_embs, None

    batch, seq_len, emb = concept_embs.shape
    concept_num = concept_causal_matrix.shape[0]

    causal, s = _sample_weight_matrix(
        time_causal_matrix, concept_causal_matrix, seq_len, noise_key,
        temperature=temperature, sample_type=sample_type)
    # torch.norm default = Frobenius norm over the FULL (max_len, C) matrix.
    step_norm_loss = l1_lambda * jnp.linalg.norm(causal) if training else None

    # Tiny per-token weight gather, done once in the wrapper: (B, S, 1) f32.
    w = jnp.take_along_axis(
        jnp.broadcast_to(s[None], (batch, seq_len, concept_num)),
        concepts.astype(jnp.int32)[..., None], axis=2)

    # Flatten to lane/sublane-dense (B*S, E) rows.
    n_rows = batch * seq_len
    embs_flat = concept_embs.reshape(n_rows, emb)
    w_flat = w.reshape(n_rows, 1).astype(jnp.float32)

    itemsize = concept_embs.dtype.itemsize
    tr = _pick_row_tile(n_rows, emb, itemsize)
    n_pad = ((n_rows + tr - 1) // tr) * tr
    if n_pad != n_rows:
        embs_flat = jnp.pad(embs_flat, ((0, n_pad - n_rows), (0, 0)))
        w_flat = jnp.pad(w_flat, ((0, n_pad - n_rows), (0, 0)))

    bytes_accessed = 2 * n_rows * emb * itemsize + n_rows * 4
    cost = pl.CostEstimate(flops=n_rows * emb, transcendentals=0,
                           bytes_accessed=bytes_accessed)

    out_flat = pl.pallas_call(
        _scale_rows_kernel,
        out_shape=jax.ShapeDtypeStruct((n_pad, emb), concept_embs.dtype),
        grid=(n_pad // tr,),
        in_specs=[
            pl.BlockSpec((tr, 1), lambda i: (i, 0)),
            pl.BlockSpec((tr, emb), lambda i: (i, 0)),
        ],
        out_specs=pl.BlockSpec((tr, emb), lambda i: (i, 0)),
        compiler_params=pltpu.CompilerParams(
            dimension_semantics=("parallel",),
            vmem_limit_bytes=32 * 1024 * 1024),
        cost_estimate=cost,
    )(w_flat, embs_flat)

    out = out_flat[:n_rows].reshape(batch, seq_len, emb)
    return out, step_norm_loss


# ----------------------------------------------------------------------------
# Demo / self-check
# ----------------------------------------------------------------------------
if __name__ == "__main__":
    # Module config (small, consistent with the torch __init__ / forward).
    concept_num = 16
    max_len = 16          # max_len >= seq_len
    emb_size = 128        # multiple of 128 -> lane-dense loads/stores
    temperature = 0.1
    l1_lambda = 0.001
    sample_type = "gumbel"

    # nn.init.constant_(..., 0.5) for 'gumbel'.
    init_val = 0.5 if sample_type == "gumbel" else 0.1
    time_causal_matrix = jnp.full((max_len,), init_val, dtype=jnp.float32)
    concept_causal_matrix = jnp.full((concept_num,), init_val, dtype=jnp.float32)

    # Deterministic inputs.
    batch, seq_len = 2, 8
    key = jax.random.PRNGKey(0)
    k_emb, k_con, k_noise = jax.random.split(key, 3)
    concept_embs = jax.random.normal(k_emb, (batch, seq_len, emb_size),
                                     dtype=jnp.float32)
    concepts = jax.random.randint(k_con, (batch, seq_len), 0, concept_num,
                                  dtype=jnp.int32)

    out, loss = time_causal_regulator_forward(
        concepts, concept_embs, time_causal_matrix, concept_causal_matrix,
        k_noise, temperature=temperature, l1_lambda=l1_lambda,
        sample_type=sample_type, training=True, testing_sample=False)

    out = jax.block_until_ready(out)
    loss = jax.block_until_ready(loss)

    # Reference check against plain JAX using the same sampled weight matrix.
    causal_ref, s_ref = _sample_weight_matrix(
        time_causal_matrix, concept_causal_matrix, seq_len, k_noise,
        temperature=temperature, sample_type=sample_type)
    w_ref = jnp.take_along_axis(
        jnp.broadcast_to(s_ref[None], (batch, seq_len, concept_num)),
        concepts[..., None], axis=2)                       # (B, S, 1)
    expected = concept_embs * w_ref
    expected_loss = l1_lambda * jnp.linalg.norm(causal_ref)

    assert out.shape == concept_embs.shape and out.dtype == concept_embs.dtype
    assert jnp.isfinite(out).all()
    assert jnp.isfinite(loss)
    assert jnp.allclose(out, expected, atol=1e-5, rtol=1e-5)
    assert jnp.allclose(loss, expected_loss, atol=1e-6, rtol=1e-6)
    print("KERNEL_OK")
</pallas_src>

<mosaic_0001>
module attributes {stable_mosaic.version = 11 : i64} {
  func.func @_scale_rows_kernel(%arg0: i32, %arg1: memref<8x1xf32, #tpu.memory_space<vmem>>, %arg2: memref<8x128xf32, #tpu.memory_space<vmem>>, %arg3: memref<8x128xf32, #tpu.memory_space<vmem>>) attributes {dimension_semantics = [#tpu.dimension_semantics<parallel>], iteration_bounds = array<i64: 2>, scalar_prefetch = 0 : i64, scratch_operands = 0 : i64, tpu.core_type = #tpu.core_type<tc>, window_params = [{transform_indices = @transform_0, window_bounds = array<i64: 8, 1>}, {transform_indices = @transform_1, window_bounds = array<i64: 8, 128>}, {transform_indices = @transform_2, window_bounds = array<i64: 8, 128>}]} {
    %c0 = arith.constant 0 : index
    %c0_0 = arith.constant 0 : index
    %0 = vector.load %arg2[%c0, %c0_0] : memref<8x128xf32, #tpu.memory_space<vmem>>, vector<8x128xf32>
    %c0_1 = arith.constant 0 : index
    %c0_2 = arith.constant 0 : index
    %1 = vector.load %arg1[%c0_1, %c0_2] : memref<8x1xf32, #tpu.memory_space<vmem>>, vector<8x1xf32>
    %2 = vector.broadcast %1 : vector<8x1xf32> to vector<8x128xf32>
    %3 = arith.mulf %0, %2 : vector<8x128xf32>
    %c0_3 = arith.constant 0 : index
    %c0_4 = arith.constant 0 : index
    %4 = vector.load %arg3[%c0_3, %c0_4] : memref<8x128xf32, #tpu.memory_space<vmem>>, vector<8x128xf32>
    tpu.vector_store %arg3[%c0_3, %c0_4], %3 {strides = array<i32>} : memref<8x128xf32, #tpu.memory_space<vmem>>, vector<8x128xf32>,
    return
  }
  func.func @transform_0(%arg0: i32) -> (i32, i32) {
    %c0_i32 = arith.constant 0 : i32
    %c0_i32_0 = arith.constant 0 : i32
    return %arg0, %c0_i32 : i32, i32
  }
  func.func @transform_1(%arg0: i32) -> (i32, i32) {
    %c0_i32 = arith.constant 0 : i32
    %c0_i32_0 = arith.constant 0 : i32
    return %arg0, %c0_i32 : i32, i32
  }
  func.func @transform_2(%arg0: i32) -> (i32, i32) {
    %c0_i32 = arith.constant 0 : i32
    %c0_i32_0 = arith.constant 0 : i32
    return %arg0, %c0_i32 : i32, i32
  }
}

</mosaic_0001>

<llo_original>
// kernel: tpu_custom_call.1
$region0: #{tpu_custom_call.1}
  #allocation0 [shape = 'u32[]', space=smem, size = 0x4, offset = 0x4, fixed_abs, tag = 'smem constant byte address 0x4 - core index']
  #allocation1 [shape = 'u32[144,128]{1,0:T(1,128)}', space=vmem, size = 0x12000, scoped, tag = 'internal scratch']
  %s0 = inlined_call_operand.vmem [shape: f32[16,1], index: 0, kind: input, shape index: {}]
  %s1 = inlined_call_operand.vmem [shape: f32[16,128], index: 1, kind: input, shape index: {}]
  %s2 = inlined_call_operand.hbm [shape: f32[16,128], index: 2, kind: output, shape index: {}]
  %s3 = sld [smem:[#allocation0]]
  $region41: #{tpu_custom_call.1} parent=0
    _
  %s5 = ssub.s32 1, %s3
  %s6 = scalar_select 0, %s5, %s3
  $region1: #{tpu_custom_call.1} parent=0
    #allocation2 [shape = 'u8[8192]{0}', space=vmem, size = 0x2000, scoped, tag = 'output window, operand 0']
    #allocation3 [shape = 's32[2]{0}', space=sflag, size = 0x8, scoped, tag = 'scoped memory for tpu_custom_call.1']
    %7 = vsyncpa [#allocation3], 0
    %s8 = scalar_lea.sflag [#allocation3], 1
    %9 = vsyncpa %s8, 0
    loop: start=0, step=1, limit=4
    $region2: #{tpu_custom_call.1} parent=1 // loop_pre_header
      _
    $region3: #{tpu_custom_call.1} parent=1 // loop_header
      %s11 = sphi 0, %s15
      %p12 = scmp.ge.s32.totalorder %s11, 4
      %s21 = sphi 0, %s23
      %s24 = sphi 0, %s21
      %s25 = sphi 0, %s24
      %s41 = sphi 0, %s25
      %s47 = sphi 0, %s49
      %s50 = sphi 0, %s47
      %s51 = sphi 0, %s50
      %s67 = sphi 0, %s51
      %s73 = sphi 0, %s75
      %s76 = sphi 0, %s73
      %s77 = sphi 0, %s76
      %s93 = sphi 0, %s77
    $region4: #{tpu_custom_call.1} parent=1 // loop_header_branch
      %14 = sbr.rel (%p12) target = $region8
    $region5: #{tpu_custom_call.1} parent=1 // loop_body
      %s16 = ssub.s32 %s11, 1
      %s17 = ssub.s32 %s11, 2
      %s18 = sadd.s32 %s11, 1
      %s19 = ssub.s32 %s11, %s18
      %p20 = scmp.eq.s32.totalorder %s19, 0
      %s22 = sadd.s32 %s21, 1
      %s23 = scalar_select %p20, %s21, %s22
      %p26 = pneg %p20
      %p27 = scmp.eq.s32.totalorder %s11, 1
      %p28 = por %p26, %p27
      %p29 = scmp.ne.s32.totalorder %s21, %s24
      %p30 = scmp.eq.s32.totalorder %s11, 0
      %p31 = por %p29, %p30
      %p32 = scmp.ne.s32.totalorder %s21, %s24
      %p33 = scmp.eq.s32.totalorder %s16, 1
      %p34 = por %p32, %p33
      %p35 = scmp.ne.s32.totalorder %s24, %s25
      %p36 = scmp.eq.s32.totalorder %s16, 0
      %p37 = por %p35, %p36
      %p38 = scmp.ne.s32.totalorder %s24, %s25
      %p39 = scmp.eq.s32.totalorder %s17, 1
      %p40 = por %p38, %p39
      %p42 = scmp.ne.s32.totalorder %s25, %s41
      %p43 = scmp.eq.s32.totalorder %s17, 0
      %p44 = por %p42, %p43
      %s45 = ssub.s32 %s11, %s18
      %p46 = scmp.eq.s32.totalorder %s45, 0
      %s48 = sadd.s32 %s47, 1
      %s49 = scalar_select %p46, %s47, %s48
      %p52 = pneg %p46
      %p53 = scmp.eq.s32.totalorder %s11, 1
      %p54 = por %p52, %p53
      %p55 = scmp.ne.s32.totalorder %s47, %s50
      %p56 = scmp.eq.s32.totalorder %s11, 0
      %p57 = por %p55, %p56
      %p58 = scmp.ne.s32.totalorder %s47, %s50
      %p59 = scmp.eq.s32.totalorder %s16, 1
      %p60 = por %p58, %p59
      %p61 = scmp.ne.s32.totalorder %s50, %s51
      %p62 = scmp.eq.s32.totalorder %s16, 0
      %p63 = por %p61, %p62
      %p64 = scmp.ne.s32.totalorder %s50, %s51
      %p65 = scmp.eq.s32.totalorder %s17, 1
      %p66 = por %p64, %p65
      %p68 = scmp.ne.s32.totalorder %s51, %s67
      %p69 = scmp.eq.s32.totalorder %s17, 0
      %p70 = por %p68, %p69
      %s71 = ssub.s32 %s11, %s18
      %p72 = scmp.eq.s32.totalorder %s71, 0
      %s74 = sadd.s32 %s73, 1
      %s75 = scalar_select %p72, %s73, %s74
      %p78 = pneg %p72
      %p79 = scmp.eq.s32.totalorder %s11, 1
      %p80 = por %p78, %p79
      %p81 = scmp.ne.s32.totalorder %s73, %s76
      %p82 = scmp.eq.s32.totalorder %s11, 0
      %p83 = por %p81, %p82
      %p84 = scmp.ne.s32.totalorder %s73, %s76
      %p85 = scmp.eq.s32.totalorder %s16, 1
      %p86 = por %p84, %p85
      %p87 = scmp.ne.s32.totalorder %s76, %s77
      %p88 = scmp.eq.s32.totalorder %s16, 0
      %p89 = por %p87, %p88
      %p90 = scmp.ne.s32.totalorder %s76, %s77
      %p91 = scmp.eq.s32.totalorder %s17, 1
      %p92 = por %p90, %p91
      %p94 = scmp.ne.s32.totalorder %s77, %s93
      %p95 = scmp.eq.s32.totalorder %s17, 0
      %p96 = por %p94, %p95
      %p97 = scmp.le.s32.totalorder 1, %s11
      %p98 = scmp.lt.s32.totalorder %s11, 3
      %p99 = pnand %p97, %p98
      %p100 = pneg %p99
      // Predicated region
      $region9: #{tpu_custom_call.1} parent=5 // pred_check
        _
      $region10: #{tpu_custom_call.1} parent=5 // pred_check_branch
        %102 = sbr.rel (%p99) target = $region12
      $region11: #{tpu_custom_call.1} parent=5 // pred_region
        %s103 = ssub.s32 %s11, 1
      $region12: #{tpu_custom_call.1} parent=5 // pred_fallthru
        _
      %p104 = scmp.lt.s32.totalorder %s11, 2
      // Predicated region
      $region13: #{tpu_custom_call.1} parent=5 // pred_check
        %p105 = pneg %p104
      $region14: #{tpu_custom_call.1} parent=5 // pred_check_branch
        %107 = sbr.rel (%p105) target = $region16
      $region15: #{tpu_custom_call.1} parent=5 // pred_region
        // Predicated region
        $region17: #{tpu_custom_call.1} parent=15 // pred_check
          %p108 = pneg %p31
        $region18: #{tpu_custom_call.1} parent=15 // pred_check_branch
          %110 = sbr.rel (%p108) target = $region20
        $region19: #{tpu_custom_call.1} parent=15 // pred_region
          %p111 = scmp.lt.s32.totalorder %s11, 1
          %s112 = scalar_select %p111, %s11, 1
          %s113 = smul.addr %s112, 8
          %s114 = scalar_lea.vmem %s0, %s113
        $region20: #{tpu_custom_call.1} parent=15 // pred_fallthru
          _
        // Predicated region
        $region21: #{tpu_custom_call.1} parent=15 // pred_check
          %p115 = pneg %p57
        $region22: #{tpu_custom_call.1} parent=15 // pred_check_branch
          %117 = sbr.rel (%p115) target = $region24
        $region23: #{tpu_custom_call.1} parent=15 // pred_region
          %p118 = scmp.lt.s32.totalorder %s11, 1
          %s119 = scalar_select %p118, %s11, 1
          %s120 = smul.addr %s119, 8
          %s121 = scalar_lea.vmem %s1, %s120
        $region24: #{tpu_custom_call.1} parent=15 // pred_fallthru
          _
      $region16: #{tpu_custom_call.1} parent=5 // pred_fallthru
        _
      %p122 = scmp.le.s32.totalorder 1, %s11
      %p123 = scmp.lt.s32.totalorder %s11, 3
      %p124 = pnand %p122, %p123
      %p125 = pneg %p124
      // Predicated region
      $region25: #{tpu_custom_call.1} parent=5 // pred_check
        _
      $region26: #{tpu_custom_call.1} parent=5 // pred_check_branch
        %127 = sbr.rel (%p124) target = $region28
      $region27: #{tpu_custom_call.1} parent=5 // pred_region
        %s128 = ssub.s32 %s11, 1
        %p129 = scmp.lt.s32.totalorder %s16, 1
        %s130 = scalar_select %p129, %s16, 1
        %s131 = smul.addr %s130, 8
        %s132 = scalar_lea.vmem %s0, %s131
        %p133 = pneg %p37
        %p134 = pneg %p34
        %p135 = scmp.lt.s32.totalorder %s16, 1
        %s136 = scalar_select %p135, %s16, 1
        %s137 = smul.addr %s136, 8
        %s138 = scalar_lea.vmem %s1, %s137
        %p139 = pneg %p63
        %p140 = pneg %p60
        %p141 = pneg %p89
        %p142 = pneg %p86
        %s143 = sand.u32 %s76, 1
        %s144 = scalar_lea.sflag [#allocation3], %s143
        %s145 = sand.u32 %s76, 1
        %s146 = smul.addr %s145, 8
        %s147 = scalar_lea.vmem [#allocation2], %s146
        %p148 = scmp.lt.s32.totalorder %s16, 1
        %s149 = scalar_select %p148, %s16, 1
        %s150 = smul.addr %s149, 8
        %s151 = scalar_lea.vmem %s0, %s150
        %p152 = scmp.lt.s32.totalorder %s16, 1
        %s153 = scalar_select %p152, %s16, 1
        %s154 = smul.addr %s153, 8
        %s155 = scalar_lea.vmem %s1, %s154
        %v156 = vld [vmem:[%s155] sm:$0xff]
        %v157 = vld [vmem:[%s151] sm:$0xff]
        %159 = vset.pattern.permute.xlu0 0
        %160 = vperm.xlu0 %159, %v157
        %v161 = vpop.permute.xlu0 %160
        %v163 = vmul.f32 %v156, %v161
        %164 = vst [vmem:[%s147] sm:$0xff] %v163
        %s165 = sand.u32 %s76, 1
        %s166 = scalar_lea.sflag [#allocation3], %s165
        %s167 = sand.u32 %s76, 1
        %s168 = smul.addr %s167, 8
        %s169 = scalar_lea.vmem [#allocation2], %s168
        // Predicated region
        $region29: #{tpu_custom_call.1} parent=27 // pred_check
          %p170 = pneg %p86
        $region30: #{tpu_custom_call.1} parent=27 // pred_check_branch
          %172 = sbr.rel (%p170) target = $region32
        $region31: #{tpu_custom_call.1} parent=27 // pred_region
          %s174 = ssub.s32 128, 128
          %175 = vsyncadd %s166, %s174
          %s176 = smul.addr %s16, 128
          %s177 = scalar_lea.hbm %s2, %s176
          %s179 = sshll.u32 %s169, 4
          %s180 = int_to_ptr.vmem [resolvable:$true] %s179
          %182 = dma.vmem_to_hbm [thread:$0]  %s180, 128, %s177, %s166
        $region32: #{tpu_custom_call.1} parent=27 // pred_fallthru
          _
      $region28: #{tpu_custom_call.1} parent=5 // pred_fallthru
        _
      %p183 = scmp.le.s32.totalorder 2, %s11
      // Predicated region
      $region33: #{tpu_custom_call.1} parent=5 // pred_check
        %p184 = pneg %p183
      $region34: #{tpu_custom_call.1} parent=5 // pred_check_branch
        %186 = sbr.rel (%p184) target = $region36
      $region35: #{tpu_custom_call.1} parent=5 // pred_region
        %s187 = ssub.s32 %s11, 2
        // Predicated region
        $region37: #{tpu_custom_call.1} parent=35 // pred_check
          %p188 = pneg %p92
        $region38: #{tpu_custom_call.1} parent=35 // pred_check_branch
          %190 = sbr.rel (%p188) target = $region40
        $region39: #{tpu_custom_call.1} parent=35 // pred_region
          %s191 = sand.u32 %s77, 1
          %s192 = scalar_lea.sflag [#allocation3], %s191
          %s193 = sand.u32 %s77, 1
          %s194 = smul.addr %s193, 8
          %s195 = scalar_lea.vmem [#allocation2], %s194
          %196 = dma.done %s192, 128
        $region40: #{tpu_custom_call.1} parent=35 // pred_fallthru
          _
      $region36: #{tpu_custom_call.1} parent=5 // pred_fallthru
        _
    $region6: #{tpu_custom_call.1} parent=1 // loop_footer
      %s15 = sadd.s32 1, %s11
    $region7: #{tpu_custom_call.1} parent=1 // loop_footer_branch
      %10 = sbr.rel target = $region3
    $region8: #{tpu_custom_call.1} parent=1 // loop_exit
      _
    %197 = vsyncpa [#allocation3], 1
    %s198 = scalar_lea.sflag [#allocation3], 1
    %199 = vsyncpa %s198, 1

</llo_original>
